<compile_context>
chip_gen: v7x
topology: tpu7x:2x2x1
jax: 0.10.0
libtpu: 0.0.40
codegen_flags: <defaults>
</compile_context>

<pallas_src>
import functools

import jax
import jax.numpy as jnp
from jax.experimental import pallas as pl
from jax.experimental.pallas import tpu as pltpu

HIDDEN = 128          # per-head hidden width (PyTorch: nn.Linear(input_dims, 128))
H2 = 2 * HIDDEN       # concatenated actor|critic hidden width (layer-1 output lanes)
OUT_LANES = 128       # lane-dense output / layer-2 block width


def _round_up(x, m):
    return (x + m - 1) // m * m


def _normalnet_kernel(x_ref, w1_ref, w2_ref, o_ref, *, n_actions, d):
    """Fused actor+critic forward for one batch tile.

    x_ref  : (bb, D)        f32  raw state tile
    w1_ref : (rows1, 256)   bf16 [aw1|cw1] in rows [0:D], bias row at row D
    w2_ref : (rows2, 128)   bf16 block-diag layer-2 weights (aw2 -> cols [:A],
                                  cw2 -> col A) in rows [0:256], bias row at 256
    o_ref  : (bb, 128)      f32  cols [:A]=softmax probs, col A=value, rest 0
    """
    x = x_ref[...].astype(jnp.bfloat16)

    # layer 1 (actor & critic fused): (bb, D) @ (D, 256) + bias row, ReLU
    h = jnp.dot(x, w1_ref[0:d, :], preferred_element_type=jnp.float32)
    h = jnp.maximum(h + w1_ref[d:d + 1, :].astype(jnp.float32), 0.0)

    # layer 2 (block-diagonal actor|critic): (bb, 256) @ (256, 128) + bias row
    z = jnp.dot(h.astype(jnp.bfloat16), w2_ref[0:H2, :],
                preferred_element_type=jnp.float32)
    z = z + w2_ref[H2:H2 + 1, :].astype(jnp.float32)

    # masked, numerically-stable softmax over the first n_actions lanes (f32)
    col = jax.lax.broadcasted_iota(jnp.int32, z.shape, 1)
    is_act = col < n_actions
    logits = jnp.where(is_act, z, -jnp.inf)
    m = jnp.max(logits, axis=-1, keepdims=True)
    e = jnp.where(is_act, jnp.exp(logits - m), 0.0)
    inv = pl.reciprocal(jnp.sum(e, axis=-1, keepdims=True))   # exact 1/denom
    # cols < A: probs ; col A: critic value ; cols > A: exactly 0 (zero W2/b2)
    o_ref[...] = jnp.where(is_act, e * inv, z)


def pack_params(params, input_dims, n_actions, hidden=HIDDEN, dtype=jnp.bfloat16):
    """Pack the 8 Linear tensors into two contiguous bf16 slabs (done once)."""
    D, H, A = input_dims, hidden, n_actions
    assert A >= 1 and A + 1 <= OUT_LANES, "n_actions must fit in the 128-lane output"

    # layer 1: [aw1 | cw1] with the bias folded in as row D
    rows1 = _round_up(D + 1, 16)
    slab1 = jnp.zeros((rows1, 2 * H), jnp.float32)
    slab1 = slab1.at[:D, :H].set(params["aw1"])
    slab1 = slab1.at[:D, H:].set(params["cw1"])
    slab1 = slab1.at[D, :H].set(params["ab1"][0])
    slab1 = slab1.at[D, H:].set(params["cb1"][0])

    # layer 2: block diagonal, 128 lanes — actor h -> cols [:A], critic h -> col A
    rows2 = _round_up(2 * H + 1, 16)
    slab2 = jnp.zeros((rows2, OUT_LANES), jnp.float32)
    slab2 = slab2.at[:H, :A].set(params["aw2"])
    slab2 = slab2.at[H:2 * H, A:A + 1].set(params["cw2"])
    slab2 = slab2.at[2 * H, :A].set(params["ab2"][0])
    slab2 = slab2.at[2 * H, A].set(params["cb2"][0, 0])

    return slab1.astype(dtype), slab2.astype(dtype)


@functools.partial(jax.jit, static_argnames=("n_actions", "block_b"))
def normalnet_forward(state, slab1, slab2, *, n_actions, block_b=128):
    """Returns (probs, value): probs (B, A) parametrizes Categorical; value (B, 1)."""
    B, D = state.shape
    bb = min(block_b, _round_up(B, 8))          # batch tile (sublane-aligned)
    Bp = _round_up(B, bb)

    x = state.astype(jnp.float32)
    if Bp != B:
        x = jnp.pad(x, ((0, Bp - B), (0, 0)))

    param_bytes = (slab1.size * slab1.dtype.itemsize
                   + slab2.size * slab2.dtype.itemsize)
    out = pl.pallas_call(
        functools.partial(_normalnet_kernel, n_actions=n_actions, d=D),
        out_shape=jax.ShapeDtypeStruct((Bp, OUT_LANES), jnp.float32),
        grid_spec=pltpu.PrefetchScalarGridSpec(
            num_scalar_prefetch=0,
            grid=(Bp // bb,),
            in_specs=[
                pl.BlockSpec((bb, D), lambda i: (i, 0)),
                # constant index -> weight slabs stay resident in VMEM across tiles
                pl.BlockSpec(slab1.shape, lambda i: (0, 0)),
                pl.BlockSpec(slab2.shape, lambda i: (0, 0)),
            ],
            out_specs=pl.BlockSpec((bb, OUT_LANES), lambda i: (i, 0)),
        ),
        compiler_params=pltpu.CompilerParams(
            dimension_semantics=("parallel",)),     # batch tiles -> v7x's 2 TCs
        cost_estimate=pl.CostEstimate(
            flops=2 * Bp * (D * H2 + H2 * OUT_LANES),
            transcendentals=Bp * OUT_LANES,
            bytes_accessed=4 * Bp * D + param_bytes + 4 * Bp * OUT_LANES,
        ),
    )(x, slab1, slab2)

    probs = out[:B, :n_actions]
    value = out[:B, n_actions:n_actions + 1]
    return probs, value


def init_params(key, input_dims, n_actions, hidden=HIDDEN):
    """Deterministic init mimicking nn.Linear default (U[-1/sqrt(fan_in), +])."""
    def linear(key, fan_in, fan_out):
        kw, kb = jax.random.split(key)
        bound = 1.0 / jnp.sqrt(jnp.float32(fan_in))
        w = jax.random.uniform(kw, (fan_in, fan_out), jnp.float32, -bound, bound)
        b = jax.random.uniform(kb, (1, fan_out), jnp.float32, -bound, bound)
        return w, b

    k1, k2, k3, k4 = jax.random.split(key, 4)
    aw1, ab1 = linear(k1, input_dims, hidden)
    aw2, ab2 = linear(k2, hidden, n_actions)
    cw1, cb1 = linear(k3, input_dims, hidden)
    cw2, cb2 = linear(k4, hidden, 1)
    return dict(aw1=aw1, ab1=ab1, aw2=aw2, ab2=ab2,
                cw1=cw1, cb1=cb1, cw2=cw2, cb2=cb2)


def reference_forward(state, params):
    """Pure-JAX f32 reference matching the PyTorch NormalNet forward."""
    h_a = jnp.maximum(state @ params["aw1"] + params["ab1"], 0.0)
    probs = jax.nn.softmax(h_a @ params["aw2"] + params["ab2"], axis=-1)
    h_c = jnp.maximum(state @ params["cw1"] + params["cb1"], 0.0)
    value = h_c @ params["cw2"] + params["cb2"]
    return probs, value


if __name__ == "__main__":
    key = jax.random.PRNGKey(0)
    k_params, k_state = jax.random.split(key)

    batch = 256          # two 128-row MXU-friendly tiles (perf feedback: batch up)
    input_dims = 32
    n_actions = 4

    params = init_params(k_params, input_dims, n_actions)
    slab1, slab2 = pack_params(params, input_dims, n_actions)   # pack ONCE, reuse per step
    state = jax.random.normal(k_state, (batch, input_dims), jnp.float32)

    probs, value = jax.block_until_ready(
        normalnet_forward(state, slab1, slab2, n_actions=n_actions))

    # sanity: shapes, valid probability simplex, finite value
    assert probs.shape == (batch, n_actions)
    assert value.shape == (batch, 1)
    assert bool(jnp.all(probs >= 0.0))
    assert jnp.allclose(jnp.sum(probs, axis=-1), 1.0, atol=1e-5)
    assert bool(jnp.all(jnp.isfinite(value)))

    # numerical agreement with the unfused pure-JAX f32 reference
    ref_probs, ref_value = reference_forward(state, params)
    assert jnp.allclose(probs, ref_probs, atol=1e-2, rtol=1e-2)
    assert jnp.allclose(value, ref_value, atol=1e-2, rtol=1e-2)

    print("KERNEL_OK")
</pallas_src>

<mosaic_0001>
module attributes {stable_mosaic.version = 11 : i64} {
  func.func @_normalnet_kernel(%arg0: i32, %arg1: memref<128x32xf32, #tpu.memory_space<vmem>>, %arg2: memref<48x256xbf16, #tpu.memory_space<vmem>>, %arg3: memref<272x128xbf16, #tpu.memory_space<vmem>>, %arg4: memref<128x128xf32, #tpu.memory_space<vmem>>) attributes {dimension_semantics = [#tpu.dimension_semantics<parallel>], iteration_bounds = array<i64: 2>, scalar_prefetch = 0 : i64, scratch_operands = 0 : i64, tpu.core_type = #tpu.core_type<tc>, window_params = [{transform_indices = @transform_0, window_bounds = array<i64: 128, 32>}, {pipeline_mode = #tpu.pipeline_mode<synchronous>, transform_indices = @transform_1, window_bounds = array<i64: 48, 256>}, {pipeline_mode = #tpu.pipeline_mode<synchronous>, transform_indices = @transform_2, window_bounds = array<i64: 272, 128>}, {transform_indices = @transform_3, window_bounds = array<i64: 128, 128>}]} {
    %c0 = arith.constant 0 : index
    %c0_0 = arith.constant 0 : index
    %0 = vector.load %arg1[%c0, %c0_0] : memref<128x32xf32, #tpu.memory_space<vmem>>, vector<128x32xf32>
    %1 = arith.truncf %0 : vector<128x32xf32> to vector<128x32xbf16>
    %c0_1 = arith.constant 0 : index
    %c0_2 = arith.constant 0 : index
    %2 = vector.load %arg2[%c0_1, %c0_2] : memref<48x256xbf16, #tpu.memory_space<vmem>>, vector<32x256xbf16>
    %cst = arith.constant dense<0.000000e+00> : vector<128x256xf32>
    %3 = tpu.matmul %1, %2, %cst {dimension_numbers = #tpu.dot_dimension_numbers<[1], [0], [0], [1], [0, 0, 1, 1], [], []>} : vector<128x32xbf16>, vector<32x256xbf16>, vector<128x256xf32> -> vector<128x256xf32>
    %c32 = arith.constant 32 : index
    %c0_3 = arith.constant 0 : index
    %4 = vector.load %arg2[%c32, %c0_3] : memref<48x256xbf16, #tpu.memory_space<vmem>>, vector<1x256xbf16>
    %5 = arith.extf %4 : vector<1x256xbf16> to vector<1x256xf32>
    %6 = vector.broadcast %5 : vector<1x256xf32> to vector<128x256xf32>
    %7 = arith.addf %3, %6 : vector<128x256xf32>
    %cst_4 = arith.constant 0.000000e+00 : f32
    %8 = vector.broadcast %cst_4 : f32 to vector<128x256xf32>
    %9 = arith.maximumf %7, %8 : vector<128x256xf32>
    %10 = arith.truncf %9 : vector<128x256xf32> to vector<128x256xbf16>
    %c0_5 = arith.constant 0 : index
    %c0_6 = arith.constant 0 : index
    %11 = vector.load %arg3[%c0_5, %c0_6] : memref<272x128xbf16, #tpu.memory_space<vmem>>, vector<256x128xbf16>
    %cst_7 = arith.constant dense<0.000000e+00> : vector<128x128xf32>
    %12 = tpu.matmul %10, %11, %cst_7 {dimension_numbers = #tpu.dot_dimension_numbers<[1], [0], [0], [1], [0, 0, 1, 1], [], []>} : vector<128x256xbf16>, vector<256x128xbf16>, vector<128x128xf32> -> vector<128x128xf32>
    %c256 = arith.constant 256 : index
    %c0_8 = arith.constant 0 : index
    %13 = vector.load %arg3[%c256, %c0_8] : memref<272x128xbf16, #tpu.memory_space<vmem>>, vector<1x128xbf16>
    %14 = arith.extf %13 : vector<1x128xbf16> to vector<1x128xf32>
    %15 = vector.broadcast %14 : vector<1x128xf32> to vector<128x128xf32>
    %16 = arith.addf %12, %15 : vector<128x128xf32>
    %17 = tpu.iota {dimensions = array<i32: 1>} : vector<128x128xi32>
    %c4_i32 = arith.constant 4 : i32
    %18 = vector.broadcast %c4_i32 : i32 to vector<128x128xi32>
    %19 = arith.cmpi slt, %17, %18 : vector<128x128xi32>
    %cst_9 = arith.constant 0xFF800000 : f32
    %20 = vector.broadcast %cst_9 : f32 to vector<128x128xf32>
    %21 = arith.select %19, %16, %20 : vector<128x128xi1>, vector<128x128xf32>
    %cst_10 = arith.constant dense<0xFF800000> : vector<128xf32>
    %22 = vector.multi_reduction <maximumf>, %21, %cst_10 [1] : vector<128x128xf32> to vector<128xf32>
    %23 = vector.shape_cast %22 : vector<128xf32> to vector<128x1xf32>
    %24 = vector.broadcast %23 : vector<128x1xf32> to vector<128x128xf32>
    %25 = arith.subf %21, %24 : vector<128x128xf32>
    %26 = math.exp %25 : vector<128x128xf32>
    %cst_11 = arith.constant 0.000000e+00 : f32
    %27 = vector.broadcast %cst_11 : f32 to vector<128x128xf32>
    %28 = arith.select %19, %26, %27 : vector<128x128xi1>, vector<128x128xf32>
    %cst_12 = arith.constant dense<0.000000e+00> : vector<128xf32>
    %29 = vector.multi_reduction <add>, %28, %cst_12 [1] : vector<128x128xf32> to vector<128xf32>
    %30 = vector.shape_cast %29 : vector<128xf32> to vector<128x1xf32>
    %31 = tpu.reciprocal %30 : vector<128x1xf32> -> vector<128x1xf32>
    %32 = vector.broadcast %31 : vector<128x1xf32> to vector<128x128xf32>
    %33 = arith.mulf %28, %32 : vector<128x128xf32>
    %34 = arith.select %19, %33, %16 : vector<128x128xi1>, vector<128x128xf32>
    %c0_13 = arith.constant 0 : index
    %c0_14 = arith.constant 0 : index
    %35 = vector.load %arg4[%c0_13, %c0_14] : memref<128x128xf32, #tpu.memory_space<vmem>>, vector<128x128xf32>
    tpu.vector_store %arg4[%c0_13, %c0_14], %34 {strides = array<i32>} : memref<128x128xf32, #tpu.memory_space<vmem>>, vector<128x128xf32>,
    return
  }
  func.func @transform_0(%arg0: i32) -> (i32, i32) {
    %c0_i32 = arith.constant 0 : i32
    %c0_i32_0 = arith.constant 0 : i32
    return %arg0, %c0_i32 : i32, i32
  }
  func.func @transform_1(%arg0: i32) -> (i32, i32) {
    %c0_i32 = arith.constant 0 : i32
    %c0_i32_0 = arith.constant 0 : i32
    %c0_i32_1 = arith.constant 0 : i32
    return %c0_i32, %c0_i32_0 : i32, i32
  }
  func.func @transform_2(%arg0: i32) -> (i32, i32) {
    %c0_i32 = arith.constant 0 : i32
    %c0_i32_0 = arith.constant 0 : i32
    %c0_i32_1 = arith.constant 0 : i32
    return %c0_i32, %c0_i32_0 : i32, i32
  }
  func.func @transform_3(%arg0: i32) -> (i32, i32) {
    %c0_i32 = arith.constant 0 : i32
    %c0_i32_0 = arith.constant 0 : i32
    return %arg0, %c0_i32 : i32, i32
  }
}

</mosaic_0001>

<llo_original>
// kernel: normalnet_forward.1
$region0: #{normalnet_forward.1}
  #allocation0 [shape = 'u32[]', space=smem, size = 0x4, offset = 0x4, fixed_abs, tag = 'smem constant byte address 0x4 - core index']
  #allocation1 [shape = 'u32[144,128]{1,0:T(1,128)}', space=vmem, size = 0x12000, scoped, tag = 'internal scratch']
  %s0 = inlined_call_operand.vmem [shape: f32[256,32], index: 0, kind: input, shape index: {}]
  %s1 = inlined_call_operand.vmem [shape: bf16[48,256], index: 1, kind: input, shape index: {}]
  %s2 = inlined_call_operand.vmem [shape: bf16[272,128], index: 2, kind: input, shape index: {}]
  %s3 = inlined_call_operand.vmem [shape: f32[256,128], index: 3, kind: output, shape index: {}]
  %s4 = sld [smem:[#allocation0]]
  $region45: #{normalnet_forward.1} parent=0
    _
  %s6 = ssub.s32 1, %s4
  %s7 = scalar_select 0, %s6, %s4
  loop: start=0, step=1, limit=4
  $region2: #{normalnet_forward.1} parent=0 // loop_pre_header
    _
  $region3: #{normalnet_forward.1} parent=0 // loop_header
    %s9 = sphi 0, %s13
    %p10 = scmp.ge.s32.totalorder %s9, 4
    %s19 = sphi 0, %s21
    %s22 = sphi 0, %s19
    %s23 = sphi 0, %s22
    %s39 = sphi 0, %s23
    %s43 = sphi 0, %s43
    %s45 = sphi 0, %s43
    %s46 = sphi 0, %s45
    %s60 = sphi 0, %s46
    %s64 = sphi 0, %s64
    %s66 = sphi 0, %s64
    %s67 = sphi 0, %s66
    %s81 = sphi 0, %s67
    %s87 = sphi 0, %s89
    %s90 = sphi 0, %s87
    %s91 = sphi 0, %s90
    %s107 = sphi 0, %s91
  $region4: #{normalnet_forward.1} parent=0 // loop_header_branch
    %12 = sbr.rel (%p10) target = $region8
  $region5: #{normalnet_forward.1} parent=0 // loop_body
    %s14 = ssub.s32 %s9, 1
    %s15 = ssub.s32 %s9, 2
    %s16 = sadd.s32 %s9, 1
    %s17 = ssub.s32 %s9, %s16
    %p18 = scmp.eq.s32.totalorder %s17, 0
    %s20 = sadd.s32 %s19, 1
    %s21 = scalar_select %p18, %s19, %s20
    %p24 = pneg %p18
    %p25 = scmp.eq.s32.totalorder %s9, 1
    %p26 = por %p24, %p25
    %p27 = scmp.ne.s32.totalorder %s19, %s22
    %p28 = scmp.eq.s32.totalorder %s9, 0
    %p29 = por %p27, %p28
    %p30 = scmp.ne.s32.totalorder %s19, %s22
    %p31 = scmp.eq.s32.totalorder %s14, 1
    %p32 = por %p30, %p31
    %p33 = scmp.ne.s32.totalorder %s22, %s23
    %p34 = scmp.eq.s32.totalorder %s14, 0
    %p35 = por %p33, %p34
    %p36 = scmp.ne.s32.totalorder %s22, %s23
    %p37 = scmp.eq.s32.totalorder %s15, 1
    %p38 = por %p36, %p37
    %p40 = scmp.ne.s32.totalorder %s23, %s39
    %p41 = scmp.eq.s32.totalorder %s15, 0
    %p42 = por %p40, %p41
    %s44 = sadd.s32 %s43, 1
    %p47 = scmp.eq.s32.totalorder %s9, 1
    %p48 = scmp.ne.s32.totalorder %s43, %s45
    %p49 = scmp.eq.s32.totalorder %s9, 0
    %p50 = por %p48, %p49
    %p51 = scmp.ne.s32.totalorder %s43, %s45
    %p52 = scmp.eq.s32.totalorder %s14, 1
    %p53 = por %p51, %p52
    %p54 = scmp.ne.s32.totalorder %s45, %s46
    %p55 = scmp.eq.s32.totalorder %s14, 0
    %p56 = por %p54, %p55
    %p57 = scmp.ne.s32.totalorder %s45, %s46
    %p58 = scmp.eq.s32.totalorder %s15, 1
    %p59 = por %p57, %p58
    %p61 = scmp.ne.s32.totalorder %s46, %s60
    %p62 = scmp.eq.s32.totalorder %s15, 0
    %p63 = por %p61, %p62
    %s65 = sadd.s32 %s64, 1
    %p68 = scmp.eq.s32.totalorder %s9, 1
    %p69 = scmp.ne.s32.totalorder %s64, %s66
    %p70 = scmp.eq.s32.totalorder %s9, 0
    %p71 = por %p69, %p70
    %p72 = scmp.ne.s32.totalorder %s64, %s66
    %p73 = scmp.eq.s32.totalorder %s14, 1
    %p74 = por %p72, %p73
    %p75 = scmp.ne.s32.totalorder %s66, %s67
    %p76 = scmp.eq.s32.totalorder %s14, 0
    %p77 = por %p75, %p76
    %p78 = scmp.ne.s32.totalorder %s66, %s67
    %p79 = scmp.eq.s32.totalorder %s15, 1
    %p80 = por %p78, %p79
    %p82 = scmp.ne.s32.totalorder %s67, %s81
    %p83 = scmp.eq.s32.totalorder %s15, 0
    %p84 = por %p82, %p83
    %s85 = ssub.s32 %s9, %s16
    %p86 = scmp.eq.s32.totalorder %s85, 0
    %s88 = sadd.s32 %s87, 1
    %s89 = scalar_select %p86, %s87, %s88
    %p92 = pneg %p86
    %p93 = scmp.eq.s32.totalorder %s9, 1
    %p94 = por %p92, %p93
    %p95 = scmp.ne.s32.totalorder %s87, %s90
    %p96 = scmp.eq.s32.totalorder %s9, 0
    %p97 = por %p95, %p96
    %p98 = scmp.ne.s32.totalorder %s87, %s90
    %p99 = scmp.eq.s32.totalorder %s14, 1
    %p100 = por %p98, %p99
    %p101 = scmp.ne.s32.totalorder %s90, %s91
    %p102 = scmp.eq.s32.totalorder %s14, 0
    %p103 = por %p101, %p102
    %p104 = scmp.ne.s32.totalorder %s90, %s91
    %p105 = scmp.eq.s32.totalorder %s15, 1
    %p106 = por %p104, %p105
    %p108 = scmp.ne.s32.totalorder %s91, %s107
    %p109 = scmp.eq.s32.totalorder %s15, 0
    %p110 = por %p108, %p109
    %p111 = scmp.le.s32.totalorder 1, %s9
    %p112 = scmp.lt.s32.totalorder %s9, 3
    %p113 = pnand %p111, %p112
    %p114 = pneg %p113
    // Predicated region
    $region9: #{normalnet_forward.1} parent=5 // pred_check
      _
    $region10: #{normalnet_forward.1} parent=5 // pred_check_branch
      %116 = sbr.rel (%p113) target = $region12
    $region11: #{normalnet_forward.1} parent=5 // pred_region
      %s117 = ssub.s32 %s9, 1
      // Predicated region
      $region13: #{normalnet_forward.1} parent=11 // pred_check
        %p118 = pneg %p56
      $region14: #{normalnet_forward.1} parent=11 // pred_check_branch
        %120 = sbr.rel (%p118) target = $region16
      $region15: #{normalnet_forward.1} parent=11 // pred_region
        _
      $region16: #{normalnet_forward.1} parent=11 // pred_fallthru
        _
      // Predicated region
      $region17: #{normalnet_forward.1} parent=11 // pred_check
        %p121 = pneg %p77
      $region18: #{normalnet_forward.1} parent=11 // pred_check_branch
        %123 = sbr.rel (%p121) target = $region20
      $region19: #{normalnet_forward.1} parent=11 // pred_region
        _
      $region20: #{normalnet_forward.1} parent=11 // pred_fallthru
        _
    $region12: #{normalnet_forward.1} parent=5 // pred_fallthru
      _
    %p124 = scmp.lt.s32.totalorder %s9, 2
    // Predicated region
    $region21: #{normalnet_forward.1} parent=5 // pred_check
      %p125 = pneg %p124
    $region22: #{normalnet_forward.1} parent=5 // pred_check_branch
      %127 = sbr.rel (%p125) target = $region24
    $region23: #{normalnet_forward.1} parent=5 // pred_region
      // Predicated region
      $region25: #{normalnet_forward.1} parent=23 // pred_check
        %p128 = pneg %p29
      $region26: #{normalnet_forward.1} parent=23 // pred_check_branch
        %130 = sbr.rel (%p128) target = $region28
      $region27: #{normalnet_forward.1} parent=23 // pred_region
        %s131 = smul.u32 16, %s9
        %p132 = scmp.lt.s32.totalorder %s131, 31
        %s133 = scalar_select %p132, %s131, 31
        %s134 = smul.addr %s133, 8
        %s135 = scalar_lea.vmem %s0, %s134
        %s136 = smul.u32 16, %s9
      $region28: #{normalnet_forward.1} parent=23 // pred_fallthru
        _
    $region24: #{normalnet_forward.1} parent=5 // pred_fallthru
      _
    %p137 = scmp.le.s32.totalorder 1, %s9
    %p138 = scmp.lt.s32.totalorder %s9, 3
    %p139 = pnand %p137, %p138
    %p140 = pneg %p139
    // Predicated region
    $region29: #{normalnet_forward.1} parent=5 // pred_check
      _
    $region30: #{normalnet_forward.1} parent=5 // pred_check_branch
      %142 = sbr.rel (%p139) target = $region32
    $region31: #{normalnet_forward.1} parent=5 // pred_region
      %s143 = ssub.s32 %s9, 1
      %s144 = smul.u32 16, %s14
      %p145 = scmp.lt.s32.totalorder %s144, 31
      %s146 = scalar_select %p145, %s144, 31
      %s147 = smul.addr %s146, 8
      %s148 = scalar_lea.vmem %s0, %s147
      %p149 = pneg %p35
      %p150 = pneg %p32
      %p151 = pneg %p56
      %p152 = pneg %p53
      %p153 = pneg %p77
      %p154 = pneg %p74
      %p155 = pneg %p103
      %p156 = pneg %p100
      %s157 = smul.u32 16, %s14
      %p158 = scmp.lt.s32.totalorder %s157, 31
      %s159 = scalar_select %p158, %s157, 31
      %s160 = smul.addr %s159, 8
      %s161 = scalar_lea.vmem %s3, %s160
      %s162 = smul.u32 16, %s14
      %p163 = scmp.lt.s32.totalorder %s162, 31
      %s164 = scalar_select %p163, %s162, 31
      %s165 = smul.addr %s164, 8
      %s166 = scalar_lea.vmem %s0, %s165
      %s167 = smul.u32 16, %s14
      %s168 = smul.u32 16, %s14
      %p169 = scmp.lt.s32.totalorder %s168, 31
      %s170 = scalar_select %p169, %s168, 31
      %s171 = smul.addr %s170, 8
      %s172 = scalar_lea.vmem %s3, %s171
      %s173 = smul.u32 16, %s14
      %v175 = vld [vmem:[%s166] sm:$0xff]
      %v176 = vld [vmem:[%s166 + $0x8] sm:$0xff]
      %v177 = vld [vmem:[%s166 + $0x10] sm:$0xff]
      %v178 = vld [vmem:[%s166 + $0x18] sm:$0xff]
      %v179 = vld [vmem:[%s166 + $0x20] sm:$0xff]
      %v180 = vld [vmem:[%s166 + $0x28] sm:$0xff]
      %v181 = vld [vmem:[%s166 + $0x30] sm:$0xff]
      %v182 = vld [vmem:[%s166 + $0x38] sm:$0xff]
      %v183 = vld [vmem:[%s166 + $0x40] sm:$0xff]
      %v184 = vld [vmem:[%s166 + $0x48] sm:$0xff]
      %v185 = vld [vmem:[%s166 + $0x50] sm:$0xff]
      %v186 = vld [vmem:[%s166 + $0x58] sm:$0xff]
      %v187 = vld [vmem:[%s166 + $0x60] sm:$0xff]
      %v188 = vld [vmem:[%s166 + $0x68] sm:$0xff]
      %v189 = vld [vmem:[%s166 + $0x70] sm:$0xff]
      %v190 = vld [vmem:[%s166 + $0x78] sm:$0xff]
      %v191 = vpack.c.bf16 %v176, %v175
      %v192 = vpack.c.bf16 %v178, %v177
      %v193 = vpack.c.bf16 %v180, %v179
      %v194 = vpack.c.bf16 %v182, %v181
      %v195 = vpack.c.bf16 %v184, %v183
      %v196 = vpack.c.bf16 %v186, %v185
      %v197 = vpack.c.bf16 %v188, %v187
      %v198 = vpack.c.bf16 %v190, %v189
      %v199 = vld [vmem:[%s1] sm:$0xff]
      %v200 = vld [vmem:[%s1 + $0x8] sm:$0xff]
      %v201 = vld [vmem:[%s1 + $0x10] sm:$0xff]
      %v202 = vld [vmem:[%s1 + $0x18] sm:$0xff]
      %v203 = vld [vmem:[%s1 + $0x20] sm:$0x11]
      %v204 = vunpack.c.l.bf16 %v203
      %v205 = vunpack.c.h.bf16 %v203
      %v206 = vlaneseq
      %v207 = vshrl.u32 %v206, 7
      %v208 = vsub.s32 0, %v207
      %v209 = vrot.slane %v204, %v208
      %v210 = vlaneseq
      %v211 = vshrl.u32 %v210, 7
      %v212 = vsub.s32 0, %v211
      %v213 = vrot.slane %v205, %v212
      %v218 = vunpack.c.l.b16 %v199
      %v219 = vunpack.c.h.b16 %v199
      %v220 = vunpack.c.l.b16 %v200
      %v221 = vunpack.c.h.b16 %v200
      %v222 = vunpack.c.l.b16 %v201
      %v223 = vunpack.c.h.b16 %v201
      %v224 = vunpack.c.l.b16 %v202
      %v225 = vunpack.c.h.b16 %v202
      %v226 = vpack.c.b16 %v220, %v218
      %v227 = vpack.c.b16 %v221, %v219
      %v228 = vpack.c.b16 %v224, %v222
      %v229 = vpack.c.b16 %v225, %v223
      %vm234 = vcmask 261120
      %v236 = vsel %vm234, %v191, 0
      %v239 = vsel %vm234, %v192, 0
      %v242 = vsel %vm234, %v193, 0
      %v245 = vsel %vm234, %v194, 0
      %v248 = vsel %vm234, %v195, 0
      %v251 = vsel %vm234, %v196, 0
      %v254 = vsel %vm234, %v197, 0
      %v257 = vsel %vm234, %v198, 0
      %259 = vmatprep.subr.bf16.mxu0 %v227
      %260 = vmatpush1.bf16.msra.mxu0 %v226
      %261 = vmatprep.subr.bf16.mxu0 %v229
      %262 = vmatpush1.bf16.msra.mxu0 %v228
      %263 = vmatprep.subr.bf16.mxu0 0
      %264 = vmatpush1.bf16.msra.mxu0 0
      %265 = vmatprep.subr.bf16.mxu0 0
      %266 = vmatpush1.bf16.msra.mxu0 0
      %267 = vmatprep.subr.bf16.mxu0 0
      %268 = vmatpush1.bf16.msra.mxu0 0
      %269 = vmatprep.subr.bf16.mxu0 0
      %270 = vmatpush1.bf16.msra.mxu0 0
      %271 = vmatprep.subr.bf16.mxu0 0
      %272 = vmatpush1.bf16.msra.mxu0 0
      %273 = vmatprep.subr.bf16.mxu0 0
      %274 = vmatpush1.bf16.msra.mxu0 0
      %275 = vmatprep.subr.bf16.mxu0 0
      %276 = vmatpush1.bf16.msra.mxu0 0
      %277 = vmatprep.subr.bf16.mxu0 0
      %278 = vmatpush1.bf16.msra.mxu0 0
      %279 = vmatprep.subr.bf16.mxu0 0
      %280 = vmatpush1.bf16.msra.mxu0 0
      %281 = vmatprep.subr.bf16.mxu0 0
      %282 = vmatpush1.bf16.msra.mxu0 0
      %283 = vmatprep.subr.bf16.mxu0 0
      %284 = vmatpush1.bf16.msra.mxu0 0
      %285 = vmatprep.subr.bf16.mxu0 0
      %286 = vmatpush1.bf16.msra.mxu0 0
      %287 = vmatprep.subr.bf16.mxu0 0
      %288 = vmatpush1.bf16.msra.mxu0 0
      %289 = vmatprep.subr.bf16.mxu0 0
      %290 = vmatpush1.bf16.msra.mxu0 0
      %291 = vmatprep.mubr.bf16.mxu0 0
      %292 = vmatmul.mubr.bf16.gmra.mrb[0].mxu0 %v236
      %v293 = vpop.f32.mrb[0].mxu0
      %v294 = vadd.f32 %v209, %v293
      %v295 = vpop.f32.mrb[0].mxu0
      %v296 = vadd.f32 %v213, %v295
      %v297 = vpop.f32.mrb[0].mxu0
      %v298 = vadd.f32 %v209, %v297
      %v299 = vpop.f32.mrb[0].mxu0
      %v300 = vadd.f32 %v213, %v299
      %301 = vmatprep.mubr.bf16.mxu0 0
      %302 = vmatmul.mubr.bf16.gmra.mrb[0].mxu0 %v239
      %v303 = vpop.f32.mrb[0].mxu0
      %v304 = vadd.f32 %v209, %v303
      %v305 = vpop.f32.mrb[0].mxu0
      %v306 = vadd.f32 %v213, %v305
      %v307 = vpop.f32.mrb[0].mxu0
      %v308 = vadd.f32 %v209, %v307
      %v309 = vpop.f32.mrb[0].mxu0
      %v310 = vadd.f32 %v213, %v309
      %311 = vmatprep.mubr.bf16.mxu0 0
      %312 = vmatmul.mubr.bf16.gmra.mrb[0].mxu0 %v242
      %v313 = vpop.f32.mrb[0].mxu0
      %v314 = vadd.f32 %v209, %v313
      %v315 = vpop.f32.mrb[0].mxu0
      %v316 = vadd.f32 %v213, %v315
      %v317 = vpop.f32.mrb[0].mxu0
      %v318 = vadd.f32 %v209, %v317
      %v319 = vpop.f32.mrb[0].mxu0
      %v320 = vadd.f32 %v213, %v319
      %321 = vmatprep.mubr.bf16.mxu0 0
      %322 = vmatmul.mubr.bf16.gmra.mrb[0].mxu0 %v245
      %v323 = vpop.f32.mrb[0].mxu0
      %v324 = vadd.f32 %v209, %v323
      %v325 = vpop.f32.mrb[0].mxu0
      %v326 = vadd.f32 %v213, %v325
      %v327 = vpop.f32.mrb[0].mxu0
      %v328 = vadd.f32 %v209, %v327
      %v329 = vpop.f32.mrb[0].mxu0
      %v330 = vadd.f32 %v213, %v329
      %331 = vmatprep.mubr.bf16.mxu0 0
      %332 = vmatmul.mubr.bf16.gmra.mrb[0].mxu0 %v248
      %v333 = vpop.f32.mrb[0].mxu0
      %v334 = vadd.f32 %v209, %v333
      %v335 = vpop.f32.mrb[0].mxu0
      %v336 = vadd.f32 %v213, %v335
      %v337 = vpop.f32.mrb[0].mxu0
      %v338 = vadd.f32 %v209, %v337
      %v339 = vpop.f32.mrb[0].mxu0
      %v340 = vadd.f32 %v213, %v339
      %341 = vmatprep.mubr.bf16.mxu0 0
      %342 = vmatmul.mubr.bf16.gmra.mrb[0].mxu0 %v251
      %v343 = vpop.f32.mrb[0].mxu0
      %v344 = vadd.f32 %v209, %v343
      %v345 = vpop.f32.mrb[0].mxu0
      %v346 = vadd.f32 %v213, %v345
      %v347 = vpop.f32.mrb[0].mxu0
      %v348 = vadd.f32 %v209, %v347
      %v349 = vpop.f32.mrb[0].mxu0
      %v350 = vadd.f32 %v213, %v349
      %351 = vmatprep.mubr.bf16.mxu0 0
      %352 = vmatmul.mubr.bf16.gmra.mrb[0].mxu0 %v254
      %v353 = vpop.f32.mrb[0].mxu0
      %v354 = vadd.f32 %v209, %v353
      %v355 = vpop.f32.mrb[0].mxu0
      %v356 = vadd.f32 %v213, %v355
      %v357 = vpop.f32.mrb[0].mxu0
      %v358 = vadd.f32 %v209, %v357
      %v359 = vpop.f32.mrb[0].mxu0
      %v360 = vadd.f32 %v213, %v359
      %361 = vmatprep.mubr.bf16.mxu0 0
      %362 = vmatmul.mubr.bf16.gmra.mrb[0].mxu0 %v257
      %v363 = vpop.f32.mrb[0].mxu0
      %v364 = vadd.f32 %v209, %v363
      %v365 = vpop.f32.mrb[0].mxu0
      %v366 = vadd.f32 %v213, %v365
      %v367 = vpop.f32.mrb[0].mxu0
      %v368 = vadd.f32 %v209, %v367
      %v369 = vpop.f32.mrb[0].mxu0
      %v370 = vadd.f32 %v213, %v369
      %371 = vdwg.mxu0
      %v372 = vmax.f32 %v294, 0.0
      %v373 = vmax.f32 %v296, 0.0
      %v374 = vmax.f32 %v298, 0.0
      %v375 = vmax.f32 %v300, 0.0
      %v376 = vmax.f32 %v304, 0.0
      %v377 = vmax.f32 %v306, 0.0
      %v378 = vmax.f32 %v308, 0.0
      %v379 = vmax.f32 %v310, 0.0
      %v380 = vmax.f32 %v314, 0.0
      %v381 = vmax.f32 %v316, 0.0
      %v382 = vmax.f32 %v318, 0.0
      %v383 = vmax.f32 %v320, 0.0
      %v384 = vmax.f32 %v324, 0.0
      %v385 = vmax.f32 %v326, 0.0
      %v386 = vmax.f32 %v328, 0.0
      %v387 = vmax.f32 %v330, 0.0
      %v388 = vmax.f32 %v334, 0.0
      %v389 = vmax.f32 %v336, 0.0
      %v390 = vmax.f32 %v338, 0.0
      %v391 = vmax.f32 %v340, 0.0
      %v392 = vmax.f32 %v344, 0.0
      %v393 = vmax.f32 %v346, 0.0
      %v394 = vmax.f32 %v348, 0.0
      %v395 = vmax.f32 %v350, 0.0
      %v396 = vmax.f32 %v354, 0.0
      %v397 = vmax.f32 %v356, 0.0
      %v398 = vmax.f32 %v358, 0.0
      %v399 = vmax.f32 %v360, 0.0
      %v400 = vmax.f32 %v364, 0.0
      %v401 = vmax.f32 %v366, 0.0
      %v402 = vmax.f32 %v368, 0.0
      %v403 = vmax.f32 %v370, 0.0
      %v404 = vpack.c.bf16 %v374, %v372
      %v405 = vpack.c.bf16 %v375, %v373
      %v406 = vpack.c.bf16 %v378, %v376
      %v407 = vpack.c.bf16 %v379, %v377
      %v408 = vpack.c.bf16 %v382, %v380
      %v409 = vpack.c.bf16 %v383, %v381
      %v410 = vpack.c.bf16 %v386, %v384
      %v411 = vpack.c.bf16 %v387, %v385
      %v412 = vpack.c.bf16 %v390, %v388
      %v413 = vpack.c.bf16 %v391, %v389
      %v414 = vpack.c.bf16 %v394, %v392
      %v415 = vpack.c.bf16 %v395, %v393
      %v416 = vpack.c.bf16 %v398, %v396
      %v417 = vpack.c.bf16 %v399, %v397
      %v418 = vpack.c.bf16 %v402, %v400
      %v419 = vpack.c.bf16 %v403, %v401
      %v420 = vld [vmem:[%s2] sm:$0xf]
      %v421 = vld [vmem:[%s2 + $0x4] sm:$0xf]
      %v422 = vld [vmem:[%s2 + $0x8] sm:$0xf]
      %v423 = vld [vmem:[%s2 + $0xc] sm:$0xf]
      %v424 = vld [vmem:[%s2 + $0x10] sm:$0xf]
      %v425 = vld [vmem:[%s2 + $0x14] sm:$0xf]
      %v426 = vld [vmem:[%s2 + $0x18] sm:$0xf]
      %v427 = vld [vmem:[%s2 + $0x1c] sm:$0xf]
      %v428 = vld [vmem:[%s2 + $0x20] sm:$0xf]
      %v429 = vld [vmem:[%s2 + $0x24] sm:$0xf]
      %v430 = vld [vmem:[%s2 + $0x28] sm:$0xf]
      %v431 = vld [vmem:[%s2 + $0x2c] sm:$0xf]
      %v432 = vld [vmem:[%s2 + $0x30] sm:$0xf]
      %v433 = vld [vmem:[%s2 + $0x34] sm:$0xf]
      %v434 = vld [vmem:[%s2 + $0x38] sm:$0xf]
      %v435 = vld [vmem:[%s2 + $0x3c] sm:$0xf]
      %v436 = vld [vmem:[%s2 + $0x40] sm:$0xf]
      %v437 = vld [vmem:[%s2 + $0x44] sm:$0xf]
      %v438 = vld [vmem:[%s2 + $0x48] sm:$0xf]
      %v439 = vld [vmem:[%s2 + $0x4c] sm:$0xf]
      %v440 = vld [vmem:[%s2 + $0x50] sm:$0xf]
      %v441 = vld [vmem:[%s2 + $0x54] sm:$0xf]
      %v442 = vld [vmem:[%s2 + $0x58] sm:$0xf]
      %v443 = vld [vmem:[%s2 + $0x5c] sm:$0xf]
      %v444 = vld [vmem:[%s2 + $0x60] sm:$0xf]
      %v445 = vld [vmem:[%s2 + $0x64] sm:$0xf]
      %v446 = vld [vmem:[%s2 + $0x68] sm:$0xf]
      %v447 = vld [vmem:[%s2 + $0x6c] sm:$0xf]
      %v448 = vld [vmem:[%s2 + $0x70] sm:$0xf]
      %v449 = vld [vmem:[%s2 + $0x74] sm:$0xf]
      %v450 = vld [vmem:[%s2 + $0x78] sm:$0xf]
      %v451 = vld [vmem:[%s2 + $0x7c] sm:$0xf]
      %v452 = vld [vmem:[%s2 + $0x80] sm:$0x1]
      %v453 = vunpack.c.l.bf16 %v452
      %v454 = vlaneseq
      %v455 = vshrl.u32 %v454, 7
      %v456 = vsub.s32 0, %v455
      %v457 = vrot.slane %v453, %v456
      %v490 = vunpack.c.l.b16 %v420
      %v491 = vunpack.c.l.b16 %v421
      %v492 = vunpack.c.l.b16 %v422
      %v493 = vunpack.c.l.b16 %v423
      %v494 = vunpack.c.l.b16 %v424
      %v495 = vunpack.c.l.b16 %v425
      %v496 = vunpack.c.l.b16 %v426
      %v497 = vunpack.c.l.b16 %v427
      %v498 = vunpack.c.l.b16 %v428
      %v499 = vunpack.c.l.b16 %v429
      %v500 = vunpack.c.l.b16 %v430
      %v501 = vunpack.c.l.b16 %v431
      %v502 = vunpack.c.l.b16 %v432
      %v503 = vunpack.c.l.b16 %v433
      %v504 = vunpack.c.l.b16 %v434
      %v505 = vunpack.c.l.b16 %v435
      %v506 = vunpack.c.l.b16 %v436
      %v507 = vunpack.c.l.b16 %v437
      %v508 = vunpack.c.l.b16 %v438
      %v509 = vunpack.c.l.b16 %v439
      %v510 = vunpack.c.l.b16 %v440
      %v511 = vunpack.c.l.b16 %v441
      %v512 = vunpack.c.l.b16 %v442
      %v513 = vunpack.c.l.b16 %v443
      %v514 = vunpack.c.l.b16 %v444
      %v515 = vunpack.c.l.b16 %v445
      %v516 = vunpack.c.l.b16 %v446
      %v517 = vunpack.c.l.b16 %v447
      %v518 = vunpack.c.l.b16 %v448
      %v519 = vunpack.c.l.b16 %v449
      %v520 = vunpack.c.l.b16 %v450
      %v521 = vunpack.c.l.b16 %v451
      %v522 = vpack.c.b16 %v491, %v490
      %v523 = vpack.c.b16 %v493, %v492
      %v524 = vpack.c.b16 %v495, %v494
      %v525 = vpack.c.b16 %v497, %v496
      %v526 = vpack.c.b16 %v499, %v498
      %v527 = vpack.c.b16 %v501, %v500
      %v528 = vpack.c.b16 %v503, %v502
      %v529 = vpack.c.b16 %v505, %v504
      %v530 = vpack.c.b16 %v507, %v506
      %v531 = vpack.c.b16 %v509, %v508
      %v532 = vpack.c.b16 %v511, %v510
      %v533 = vpack.c.b16 %v513, %v512
      %v534 = vpack.c.b16 %v515, %v514
      %v535 = vpack.c.b16 %v517, %v516
      %v536 = vpack.c.b16 %v519, %v518
      %v537 = vpack.c.b16 %v521, %v520
      %554 = vmatprep.subr.bf16.mxu0 0
      %555 = vmatpush1.bf16.msra.mxu0 %v522
      %556 = vmatprep.subr.bf16.mxu0 0
      %557 = vmatpush1.bf16.msra.mxu0 %v523
      %558 = vmatprep.subr.bf16.mxu0 0
      %559 = vmatpush1.bf16.msra.mxu0 %v524
      %560 = vmatprep.subr.bf16.mxu0 0
      %561 = vmatpush1.bf16.msra.mxu0 %v525
      %562 = vmatprep.subr.bf16.mxu0 0
      %563 = vmatpush1.bf16.msra.mxu0 %v526
      %564 = vmatprep.subr.bf16.mxu0 0
      %565 = vmatpush1.bf16.msra.mxu0 %v527
      %566 = vmatprep.subr.bf16.mxu0 0
      %567 = vmatpush1.bf16.msra.mxu0 %v528
      %568 = vmatprep.subr.bf16.mxu0 0
      %569 = vmatpush1.bf16.msra.mxu0 %v529
      %570 = vmatprep.subr.bf16.mxu0 0
      %571 = vmatpush1.bf16.msra.mxu0 %v530
      %572 = vmatprep.subr.bf16.mxu0 0
      %573 = vmatpush1.bf16.msra.mxu0 %v531
      %574 = vmatprep.subr.bf16.mxu0 0
      %575 = vmatpush1.bf16.msra.mxu0 %v532
      %576 = vmatprep.subr.bf16.mxu0 0
      %577 = vmatpush1.bf16.msra.mxu0 %v533
      %578 = vmatprep.subr.bf16.mxu0 0
      %579 = vmatpush1.bf16.msra.mxu0 %v534
      %580 = vmatprep.subr.bf16.mxu0 0
      %581 = vmatpush1.bf16.msra.mxu0 %v535
      %582 = vmatprep.subr.bf16.mxu0 0
      %583 = vmatpush1.bf16.msra.mxu0 %v536
      %584 = vmatprep.subr.bf16.mxu0 0
      %585 = vmatpush1.bf16.msra.mxu0 %v537
      %586 = vmatprep.mubr.bf16.mxu0 %v405
      %587 = vmatmul.mubr.bf16.gmra.mrb[0].mxu0 %v404
      %v588 = vpop.f32.mrb[0].mxu0
      %v589 = vadd.f32 %v457, %v588
      %v590 = vpop.f32.mrb[0].mxu0
      %v591 = vpop.f32.mrb[0].mxu0
      %v592 = vadd.f32 %v457, %v591
      %v593 = vpop.f32.mrb[0].mxu0
      %594 = vmatprep.mubr.bf16.mxu0 %v407
      %595 = vmatmul.mubr.bf16.gmra.mrb[0].mxu0 %v406
      %v596 = vpop.f32.mrb[0].mxu0
      %v597 = vadd.f32 %v457, %v596
      %v598 = vpop.f32.mrb[0].mxu0
      %v599 = vpop.f32.mrb[0].mxu0
      %v600 = vadd.f32 %v457, %v599
      %v601 = vpop.f32.mrb[0].mxu0
      %602 = vmatprep.mubr.bf16.mxu0 %v409
      %603 = vmatmul.mubr.bf16.gmra.mrb[0].mxu0 %v408
      %v604 = vpop.f32.mrb[0].mxu0
      %v605 = vadd.f32 %v457, %v604
      %v606 = vpop.f32.mrb[0].mxu0
      %v607 = vpop.f32.mrb[0].mxu0
      %v608 = vadd.f32 %v457, %v607
      %v609 = vpop.f32.mrb[0].mxu0
      %610 = vmatprep.mubr.bf16.mxu0 %v411
      %611 = vmatmul.mubr.bf16.gmra.mrb[0].mxu0 %v410
      %v612 = vpop.f32.mrb[0].mxu0
      %v613 = vadd.f32 %v457, %v612
      %v614 = vpop.f32.mrb[0].mxu0
      %v615 = vpop.f32.mrb[0].mxu0
      %v616 = vadd.f32 %v457, %v615
      %v617 = vpop.f32.mrb[0].mxu0
      %618 = vmatprep.mubr.bf16.mxu0 %v413
      %619 = vmatmul.mubr.bf16.gmra.mrb[0].mxu0 %v412
      %v620 = vpop.f32.mrb[0].mxu0
      %v621 = vadd.f32 %v457, %v620
      %v622 = vpop.f32.mrb[0].mxu0
      %v623 = vpop.f32.mrb[0].mxu0
      %v624 = vadd.f32 %v457, %v623
      %v625 = vpop.f32.mrb[0].mxu0
      %626 = vmatprep.mubr.bf16.mxu0 %v415
      %627 = vmatmul.mubr.bf16.gmra.mrb[0].mxu0 %v414
      %v628 = vpop.f32.mrb[0].mxu0
      %v629 = vadd.f32 %v457, %v628
      %v630 = vpop.f32.mrb[0].mxu0
      %v631 = vpop.f32.mrb[0].mxu0
      %v632 = vadd.f32 %v457, %v631
      %v633 = vpop.f32.mrb[0].mxu0
      %634 = vmatprep.mubr.bf16.mxu0 %v417
      %635 = vmatmul.mubr.bf16.gmra.mrb[0].mxu0 %v416
      %v636 = vpop.f32.mrb[0].mxu0
      %v637 = vadd.f32 %v457, %v636
      %v638 = vpop.f32.mrb[0].mxu0
      %v639 = vpop.f32.mrb[0].mxu0
      %v640 = vadd.f32 %v457, %v639
      %v641 = vpop.f32.mrb[0].mxu0
      %642 = vmatprep.mubr.bf16.mxu0 %v419
      %643 = vmatmul.mubr.bf16.gmra.mrb[0].mxu0 %v418
      %v644 = vpop.f32.mrb[0].mxu0
      %v645 = vadd.f32 %v457, %v644
      %v646 = vpop.f32.mrb[0].mxu0
      %v647 = vpop.f32.mrb[0].mxu0
      %v648 = vadd.f32 %v457, %v647
      %v649 = vpop.f32.mrb[0].mxu0
      %650 = vdwg.mxu0
      %v651 = vlaneseq
      %v652 = vand.u32 %v651, 127
      %vm653 = vcmp.lt.s32.totalorder %v652, 4
      %v654 = vsel %vm653, %v589, -inf
      %v655 = vsel %vm653, %v592, -inf
      %v656 = vsel %vm653, %v597, -inf
      %v657 = vsel %vm653, %v600, -inf
      %v658 = vsel %vm653, %v605, -inf
      %v659 = vsel %vm653, %v608, -inf
      %v660 = vsel %vm653, %v613, -inf
      %v661 = vsel %vm653, %v616, -inf
      %v662 = vsel %vm653, %v621, -inf
      %v663 = vsel %vm653, %v624, -inf
      %v664 = vsel %vm653, %v629, -inf
      %v665 = vsel %vm653, %v632, -inf
      %v666 = vsel %vm653, %v637, -inf
      %v667 = vsel %vm653, %v640, -inf
      %v668 = vsel %vm653, %v645, -inf
      %v669 = vsel %vm653, %v648, -inf
      %670 = vmax.xlane.f32.xlu0 %v654
      %v671 = vpop.xlane.xlu0 %670
      %672 = vmax.xlane.f32.xlu0 %v655
      %v673 = vpop.xlane.xlu0 %672
      %674 = vmax.xlane.f32.xlu0 %v656
      %v675 = vpop.xlane.xlu0 %674
      %676 = vmax.xlane.f32.xlu0 %v657
      %v677 = vpop.xlane.xlu0 %676
      %678 = vmax.xlane.f32.xlu0 %v658
      %v679 = vpop.xlane.xlu0 %678
      %680 = vmax.xlane.f32.xlu0 %v659
      %v681 = vpop.xlane.xlu0 %680
      %682 = vmax.xlane.f32.xlu0 %v660
      %v683 = vpop.xlane.xlu0 %682
      %684 = vmax.xlane.f32.xlu0 %v661
      %v685 = vpop.xlane.xlu0 %684
      %686 = vmax.xlane.f32.xlu0 %v662
      %v687 = vpop.xlane.xlu0 %686
      %688 = vmax.xlane.f32.xlu0 %v663
      %v689 = vpop.xlane.xlu0 %688
      %690 = vmax.xlane.f32.xlu0 %v664
      %v691 = vpop.xlane.xlu0 %690
      %692 = vmax.xlane.f32.xlu0 %v665
      %v693 = vpop.xlane.xlu0 %692
      %694 = vmax.xlane.f32.xlu0 %v666
      %v695 = vpop.xlane.xlu0 %694
      %696 = vmax.xlane.f32.xlu0 %v667
      %v697 = vpop.xlane.xlu0 %696
      %698 = vmax.xlane.f32.xlu0 %v668
      %v699 = vpop.xlane.xlu0 %698
      %700 = vmax.xlane.f32.xlu0 %v669
      %v701 = vpop.xlane.xlu0 %700
      %v702 = vsub.f32 %v654, %v671
      %v703 = vsub.f32 %v655, %v673
      %v704 = vsub.f32 %v656, %v675
      %v705 = vsub.f32 %v657, %v677
      %v706 = vsub.f32 %v658, %v679
      %v707 = vsub.f32 %v659, %v681
      %v708 = vsub.f32 %v660, %v683
      %v709 = vsub.f32 %v661, %v685
      %v710 = vsub.f32 %v662, %v687
      %v711 = vsub.f32 %v663, %v689
      %v712 = vsub.f32 %v664, %v691
      %v713 = vsub.f32 %v665, %v693
      %v714 = vsub.f32 %v666, %v695
      %v715 = vsub.f32 %v667, %v697
      %v716 = vsub.f32 %v668, %v699
      %v717 = vsub.f32 %v669, %v701
      %v718 = vmul.f32 %v702, 1.442695
      %v719 = vpow.pop %v718
      %v720 = vmul.f32 %v703, 1.442695
      %v721 = vpow.pop %v720
      %v722 = vmul.f32 %v704, 1.442695
      %v723 = vpow.pop %v722
      %v724 = vmul.f32 %v705, 1.442695
      %v725 = vpow.pop %v724
      %v726 = vmul.f32 %v706, 1.442695
      %v727 = vpow.pop %v726
      %v728 = vmul.f32 %v707, 1.442695
      %v729 = vpow.pop %v728
      %v730 = vmul.f32 %v708, 1.442695
      %v731 = vpow.pop %v730
      %v732 = vmul.f32 %v709, 1.442695
      %v733 = vpow.pop %v732
      %v734 = vmul.f32 %v710, 1.442695
      %v735 = vpow.pop %v734
      %v736 = vmul.f32 %v711, 1.442695
      %v737 = vpow.pop %v736
      %v738 = vmul.f32 %v712, 1.442695
      %v739 = vpow.pop %v738
      %v740 = vmul.f32 %v713, 1.442695
      %v741 = vpow.pop %v740
      %v742 = vmul.f32 %v714, 1.442695
      %v743 = vpow.pop %v742
      %v744 = vmul.f32 %v715, 1.442695
      %v745 = vpow.pop %v744
      %v746 = vmul.f32 %v716, 1.442695
      %v747 = vpow.pop %v746
      %v748 = vmul.f32 %v717, 1.442695
      %v749 = vpow.pop %v748
      %v750 = vsel %vm653, %v719, 0.0
      %v751 = vsel %vm653, %v721, 0.0
      %v752 = vsel %vm653, %v723, 0.0
      %v753 = vsel %vm653, %v725, 0.0
      %v754 = vsel %vm653, %v727, 0.0
      %v755 = vsel %vm653, %v729, 0.0
      %v756 = vsel %vm653, %v731, 0.0
      %v757 = vsel %vm653, %v733, 0.0
      %v758 = vsel %vm653, %v735, 0.0
      %v759 = vsel %vm653, %v737, 0.0
      %v760 = vsel %vm653, %v739, 0.0
      %v761 = vsel %vm653, %v741, 0.0
      %v762 = vsel %vm653, %v743, 0.0
      %v763 = vsel %vm653, %v745, 0.0
      %v764 = vsel %vm653, %v747, 0.0
      %v765 = vsel %vm653, %v749, 0.0
      %766 = vadd.xlane.f32.xlu0 %v750
      %v767 = vpop.xlane.xlu0 %766
      %768 = vadd.xlane.f32.xlu0 %v751
      %v769 = vpop.xlane.xlu0 %768
      %770 = vadd.xlane.f32.xlu0 %v752
      %v771 = vpop.xlane.xlu0 %770
      %772 = vadd.xlane.f32.xlu0 %v753
      %v773 = vpop.xlane.xlu0 %772
      %774 = vadd.xlane.f32.xlu0 %v754
      %v775 = vpop.xlane.xlu0 %774
      %776 = vadd.xlane.f32.xlu0 %v755
      %v777 = vpop.xlane.xlu0 %776
      %778 = vadd.xlane.f32.xlu0 %v756
      %v779 = vpop.xlane.xlu0 %778
      %780 = vadd.xlane.f32.xlu0 %v757
      %v781 = vpop.xlane.xlu0 %780
      %782 = vadd.xlane.f32.xlu0 %v758
      %v783 = vpop.xlane.xlu0 %782
      %784 = vadd.xlane.f32.xlu0 %v759
      %v785 = vpop.xlane.xlu0 %784
      %786 = vadd.xlane.f32.xlu0 %v760
      %v787 = vpop.xlane.xlu0 %786
      %788 = vadd.xlane.f32.xlu0 %v761
      %v789 = vpop.xlane.xlu0 %788
      %790 = vadd.xlane.f32.xlu0 %v762
      %v791 = vpop.xlane.xlu0 %790
      %792 = vadd.xlane.f32.xlu0 %v763
      %v793 = vpop.xlane.xlu0 %792
      %794 = vadd.xlane.f32.xlu0 %v764
      %v795 = vpop.xlane.xlu0 %794
      %796 = vadd.xlane.f32.xlu0 %v765
      %v797 = vpop.xlane.xlu0 %796
      %v798 = vrcp.pop %v767
      %v799 = vrcp.pop %v769
      %v800 = vrcp.pop %v771
      %v801 = vrcp.pop %v773
      %v802 = vrcp.pop %v775
      %v803 = vrcp.pop %v777
      %v804 = vrcp.pop %v779
      %v805 = vrcp.pop %v781
      %v806 = vrcp.pop %v783
      %v807 = vrcp.pop %v785
      %v808 = vrcp.pop %v787
      %v809 = vrcp.pop %v789
      %v810 = vrcp.pop %v791
      %v811 = vrcp.pop %v793
      %v812 = vrcp.pop %v795
      %v813 = vrcp.pop %v797
      %v814 = vmul.f32 %v750, %v798
      %v815 = vmul.f32 %v751, %v799
      %v816 = vmul.f32 %v752, %v800
      %v817 = vmul.f32 %v753, %v801
      %v818 = vmul.f32 %v754, %v802
      %v819 = vmul.f32 %v755, %v803
      %v820 = vmul.f32 %v756, %v804
      %v821 = vmul.f32 %v757, %v805
      %v822 = vmul.f32 %v758, %v806
      %v823 = vmul.f32 %v759, %v807
      %v824 = vmul.f32 %v760, %v808
      %v825 = vmul.f32 %v761, %v809
      %v826 = vmul.f32 %v762, %v810
      %v827 = vmul.f32 %v763, %v811
      %v828 = vmul.f32 %v764, %v812
      %v829 = vmul.f32 %v765, %v813
      %v830 = vsel %vm653, %v814, %v589
      %v831 = vsel %vm653, %v815, %v592
      %v832 = vsel %vm653, %v816, %v597
      %v833 = vsel %vm653, %v817, %v600
      %v834 = vsel %vm653, %v818, %v605
      %v835 = vsel %vm653, %v819, %v608
      %v836 = vsel %vm653, %v820, %v613
      %v837 = vsel %vm653, %v821, %v616
      %v838 = vsel %vm653, %v822, %v621
      %v839 = vsel %vm653, %v823, %v624
      %v840 = vsel %vm653, %v824, %v629
      %v841 = vsel %vm653, %v825, %v632
      %v842 = vsel %vm653, %v826, %v637
      %v843 = vsel %vm653, %v827, %v640
      %v844 = vsel %vm653, %v828, %v645
      %v845 = vsel %vm653, %v829, %v648
      %846 = vst [vmem:[%s172] sm:$0xff] %v830
      %847 = vst [vmem:[%s172 + $0x8] sm:$0xff] %v831
      %848 = vst [vmem:[%s172 + $0x10] sm:$0xff] %v832
      %849 = vst [vmem:[%s172 + $0x18] sm:$0xff] %v833
      %850 = vst [vmem:[%s172 + $0x20] sm:$0xff] %v834
      %851 = vst [vmem:[%s172 + $0x28] sm:$0xff] %v835
      %852 = vst [vmem:[%s172 + $0x30] sm:$0xff] %v836
      %853 = vst [vmem:[%s172 + $0x38] sm:$0xff] %v837
      %854 = vst [vmem:[%s172 + $0x40] sm:$0xff] %v838
      %855 = vst [vmem:[%s172 + $0x48] sm:$0xff] %v839
      %856 = vst [vmem:[%s172 + $0x50] sm:$0xff] %v840
      %857 = vst [vmem:[%s172 + $0x58] sm:$0xff] %v841
      %858 = vst [vmem:[%s172 + $0x60] sm:$0xff] %v842
      %859 = vst [vmem:[%s172 + $0x68] sm:$0xff] %v843
      %860 = vst [vmem:[%s172 + $0x70] sm:$0xff] %v844
      %861 = vst [vmem:[%s172 + $0x78] sm:$0xff] %v845
      %s862 = smul.u32 16, %s14
      %p863 = scmp.lt.s32.totalorder %s862, 31
      %s864 = scalar_select %p863, %s862, 31
      %s865 = smul.addr %s864, 8
      %s866 = scalar_lea.vmem %s3, %s865
      // Predicated region
      $region33: #{normalnet_forward.1} parent=31 // pred_check
        %p867 = pneg %p100
      $region34: #{normalnet_forward.1} parent=31 // pred_check_branch
        %869 = sbr.rel (%p867) target = $region36
      $region35: #{normalnet_forward.1} parent=31 // pred_region
        %s870 = smul.u32 16, %s14
      $region36: #{normalnet_forward.1} parent=31 // pred_fallthru
        _
    $region32: #{normalnet_forward.1} parent=5 // pred_fallthru
      _
    %p871 = scmp.le.s32.totalorder 2, %s9
    // Predicated region
    $region37: #{normalnet_forward.1} parent=5 // pred_check
      %p872 = pneg %p871
    $region38: #{normalnet_forward.1} parent=5 // pred_check_branch
      %874 = sbr.rel (%p872) target = $region40
    $region39: #{normalnet_forward.1} parent=5 // pred_region
      %s875 = ssub.s32 %s9, 2
      // Predicated region
      $region41: #{normalnet_forward.1} parent=39 // pred_check
        %p876 = pneg %p106
      $region42: #{normalnet_forward.1} parent=39 // pred_check_branch
        %878 = sbr.rel (%p876) target = $region44
      $region43: #{normalnet_forward.1} parent=39 // pred_region
        %s879 = smul.u32 16, %s15
        %p880 = scmp.lt.s32.totalorder %s879, 31
        %s881 = scalar_select %p880, %s879, 31
        %s882 = smul.addr %s881, 8
        %s883 = scalar_lea.vmem %s3, %s882
      $region44: #{normalnet_forward.1} parent=39 // pred_fallthru
        _
    $region40: #{normalnet_forward.1} parent=5 // pred_fallthru
      _
  $region6: #{normalnet_forward.1} parent=0 // loop_footer
    %s13 = sadd.s32 1, %s9
  $region7: #{normalnet_forward.1} parent=0 // loop_footer_branch
    %8 = sbr.rel target = $region3
  $region8: #{normalnet_forward.1} parent=0 // loop_exit
    _

</llo_original>
